<compile_context>
chip_gen: v6e
topology: v6e:2x2x1
jax: 0.10.0
libtpu: 0.0.40
codegen_flags: <defaults>
</compile_context>

<pallas_src>
import functools
import math

import jax
import jax.numpy as jnp
from jax.experimental import pallas as pl
from jax.experimental.pallas import tpu as pltpu


_INV_SQRT2 = 1.0 / math.sqrt(2.0)
_SQRT_2_OVER_PI = math.sqrt(2.0 / math.pi)


def _round_up(x, m):
    return (x + m - 1) // m * m


def _gelu(h, approximate):
    if approximate:
        # tanh approximation -> exp/tanh ride the otherwise-idle EUP slot.
        return 0.5 * h * (1.0 + jnp.tanh(_SQRT_2_OVER_PI * (h + 0.044715 * h * h * h)))
    # Exact (erf-based) GELU, matching torch.nn.GELU() default.
    return 0.5 * h * (1.0 + jax.lax.erf(h * _INV_SQRT2))


def _vmem_limit_bytes():
    cap = 64 * 1024 * 1024  # conservative default (v7x per-TensorCore VMEM)
    try:
        info = pltpu.get_tpu_info()
        cap = int(getattr(info, "vmem_capacity_bytes", cap) or cap)
    except Exception:
        pass
    # ~75% of physical: v5e/v6e (128 MiB) -> 96 MiB, v7x (64 MiB) -> 48 MiB.
    return min((cap * 3) // 4, 100 * 1024 * 1024)


def _choose_tiles(n, feat, hidden, x_bytes, w_bytes, vmem_limit, tile_align):
    """Pick (tile along the independent `n` axis, hidden-chunk size) under a VMEM budget.

    `feat` is the untiled feature axis (the MLP's input/output width), `hidden` the hidden
    width.  Weight residency is preferred: H is only chunked when W1+W2 cannot stay resident,
    because chunking forces the weights to be re-streamed from HBM for every row tile.
    """
    budget = int(vmem_limit * 0.85)
    w_budget = int(budget * 0.6)
    full_w = 2 * feat * hidden * w_bytes                  # W1 + W2, one copy
    if hidden <= 512 or 2 * full_w <= w_budget:           # 2x: pipeline double-buffering
        tile_h = hidden
        w_resident = 2 * full_w
    else:
        per_h = 2 * 2 * feat * w_bytes                    # dbl-buffered W1 column + W2 row
        tile_h = max(256, (w_budget // per_h) // 256 * 256)
        tile_h = min(tile_h, hidden)
        w_resident = per_h * tile_h
    # Row tile from the remaining budget: x + out (double-buffered) + f32 accumulator.
    per_row = feat * (4 * x_bytes + 4)
    tile_n = int((budget - w_resident) // max(per_row, 1))
    tile_n = max(tile_align, min(tile_n, 2048))
    tile_n = (tile_n // tile_align) * tile_align
    if tile_n >= n:
        tile_n = _round_up(n, tile_align)
    # Keep >=2 tiles on the parallel axis when n is big enough (v7x has 2 TensorCores).
    while tile_n >= 2 * tile_align and tile_n >= 256 and pl.cdiv(n, tile_n) < 2:
        tile_n = ((tile_n // 2) // tile_align) * tile_align
    return tile_n, tile_h


# --------------------------------- kernels ---------------------------------

def _mlp_lastdim_kernel(x_ref, w1_ref, b1_ref, w2_ref, b2_ref, o_ref, acc_ref=None, *,
                        n_hk, h_axis, add_residual, approximate_gelu, mxu_dtype):
    """MLP over the LAST axis of a (rows, D) view.

    x_ref : (tile_m, D)   w1_ref: (D, tile_h)   b1_ref: (1, tile_h)
    w2_ref: (tile_h, D)   b2_ref: (1, D)        o_ref : (tile_m, D)
    acc_ref: (tile_m, D) f32 scratch, only present when the hidden axis is chunked.
    """
    x = x_ref[...]
    xm = x if mxu_dtype is None else x.astype(mxu_dtype)
    w1 = w1_ref[...] if mxu_dtype is None else w1_ref[...].astype(mxu_dtype)
    # Linear 1 (this hidden chunk): native-dtype operands, f32 accumulation on the MXU.
    h = jnp.dot(xm, w1, preferred_element_type=jnp.float32)
    h = h + b1_ref[...].astype(jnp.float32)
    g = _gelu(h, approximate_gelu)
    # (Dropout: identity in eval mode.)
    w2 = w2_ref[...] if mxu_dtype is None else w2_ref[...].astype(mxu_dtype)
    part = jnp.dot(g.astype(w2.dtype), w2, preferred_element_type=jnp.float32)

    def _finalize(acc):
        out = acc + b2_ref[...].astype(jnp.float32)
        if add_residual:
            out = out + x.astype(jnp.float32)
        o_ref[...] = out.astype(o_ref.dtype)

    if n_hk == 1:
        _finalize(part)
    else:
        hk = pl.program_id(h_axis)

        @pl.when(hk == 0)
        def _():
            acc_ref[...] = part            # direct store: no zero-fill + readback on chunk 0

        @pl.when(hk > 0)
        def _():
            acc_ref[...] += part

        @pl.when(hk == n_hk - 1)
        def _():
            _finalize(acc_ref[...])


def _mlp_firstdim_kernel(x_ref, w1_ref, b1_ref, w2_ref, b2_ref, o_ref, acc_ref=None, *,
                         n_hk, h_axis, add_residual, approximate_gelu, mxu_dtype):
    """MLP over the FIRST axis of a (C, cols) view (token_mixer without wrapper transposes).

    x_ref : (C, tile_t)   w1_ref: (C, tile_h)   b1_ref: (tile_h, 1)
    w2_ref: (tile_h, C)   b2_ref: (C, 1)        o_ref : (C, tile_t)
    acc_ref: (C, tile_t) f32 scratch, only present when the hidden axis is chunked.
    """
    x = x_ref[...]
    xm = x if mxu_dtype is None else x.astype(mxu_dtype)
    w1 = w1_ref[...] if mxu_dtype is None else w1_ref[...].astype(mxu_dtype)
    # h[hh, t] = sum_c W1[c, hh] * x[c, t]  (contraction over the channel axis).
    h = jax.lax.dot_general(w1, xm, (((0,), (0,)), ((), ())),
                            preferred_element_type=jnp.float32)          # (tile_h, tile_t)
    h = h + b1_ref[...].astype(jnp.float32)
    g = _gelu(h, approximate_gelu)
    # (Dropout: identity in eval mode.)
    w2 = w2_ref[...] if mxu_dtype is None else w2_ref[...].astype(mxu_dtype)
    part = jax.lax.dot_general(w2, g.astype(w2.dtype), (((0,), (0,)), ((), ())),
                               preferred_element_type=jnp.float32)       # (C, tile_t)

    def _finalize(acc):
        out = acc + b2_ref[...].astype(jnp.float32)
        if add_residual:
            out = out + x.astype(jnp.float32)
        o_ref[...] = out.astype(o_ref.dtype)

    if n_hk == 1:
        _finalize(part)
    else:
        hk = pl.program_id(h_axis)

        @pl.when(hk == 0)
        def _():
            acc_ref[...] = part

        @pl.when(hk > 0)
        def _():
            acc_ref[...] += part

        @pl.when(hk == n_hk - 1)
        def _():
            _finalize(acc_ref[...])


# --------------------------------- wrappers ---------------------------------

def fused_mlp_lastdim(x, w1, b1, w2, b2, *, add_residual=False,
                      approximate_gelu=False, mxu_bf16=False):
    """y = [x +] Linear2(GELU(Linear1(x))) applied over the last axis of x.

    x: (..., D); w1: (D, H); b1: (H,); w2: (H, D); b2: (D,). Returns same shape as x.
    """
    orig_shape = x.shape
    D = orig_shape[-1]
    H = w1.shape[1]
    x2d = x.reshape(-1, D)
    M = x2d.shape[0]

    # Lane-dense feature axis: pad D to a multiple of 128 so stores are full-lane.
    # Zero-padded columns contribute nothing and are sliced off below.
    D_pad = _round_up(D, 128)
    if D_pad != D:
        x2d = jnp.pad(x2d, ((0, 0), (0, D_pad - D)))
        w1 = jnp.pad(w1, ((0, D_pad - D), (0, 0)))
        w2 = jnp.pad(w2, ((0, 0), (0, D_pad - D)))
        b2 = jnp.pad(b2, ((0, D_pad - D),))

    x_bytes = jnp.dtype(x.dtype).itemsize
    w_bytes = jnp.dtype(w1.dtype).itemsize
    vmem_limit = _vmem_limit_bytes()
    tile_m, tile_h = _choose_tiles(M, D_pad, H, x_bytes, w_bytes, vmem_limit, tile_align=8)

    M_pad = _round_up(M, tile_m)
    if M_pad != M:
        x2d = jnp.pad(x2d, ((0, M_pad - M), (0, 0)))

    if tile_h >= H:
        tile_h, H_pad, n_hk = H, H, 1
    else:
        H_pad = _round_up(H, tile_h)
        n_hk = H_pad // tile_h
        if H_pad != H:
            # Zero-padded hidden units contribute nothing (their W2 rows are zero).
            w1 = jnp.pad(w1, ((0, 0), (0, H_pad - H)))
            b1 = jnp.pad(b1, ((0, H_pad - H),))
            w2 = jnp.pad(w2, ((0, H_pad - H), (0, 0)))

    b1_2d = b1.reshape(1, H_pad)
    b2_2d = b2.reshape(1, D_pad)

    grid = (M_pad // tile_m, n_hk)
    weight_streams = 1 if n_hk == 1 else grid[0]   # weights stay resident <=> single H chunk

    cost = pl.CostEstimate(
        flops=int(4 * M_pad * D_pad * H_pad),
        transcendentals=int(M_pad * H_pad),
        bytes_accessed=int(2 * M_pad * D_pad * x_bytes                     # x in + out
                           + weight_streams * (w1.size + w2.size) * w_bytes
                           + (b1_2d.size + b2_2d.size) * w_bytes),
    )

    kernel = functools.partial(
        _mlp_lastdim_kernel, n_hk=n_hk, h_axis=1, add_residual=add_residual,
        approximate_gelu=approximate_gelu,
        mxu_dtype=jnp.bfloat16 if (mxu_bf16 and x.dtype == jnp.float32) else None,
    )
    scratch = [] if n_hk == 1 else [pltpu.VMEM((tile_m, D_pad), jnp.float32)]

    out2d = pl.pallas_call(
        kernel,
        out_shape=jax.ShapeDtypeStruct((M_pad, D_pad), x.dtype),
        grid_spec=pltpu.PrefetchScalarGridSpec(
            num_scalar_prefetch=0,
            grid=grid,
            in_specs=[
                pl.BlockSpec((tile_m, D_pad), lambda i, k: (i, 0)),   # x tile
                pl.BlockSpec((D_pad, tile_h), lambda i, k: (0, k)),   # W1 chunk
                pl.BlockSpec((1, tile_h), lambda i, k: (0, k)),       # b1 chunk
                pl.BlockSpec((tile_h, D_pad), lambda i, k: (k, 0)),   # W2 chunk
                pl.BlockSpec((1, D_pad), lambda i, k: (0, 0)),        # b2
            ],
            out_specs=pl.BlockSpec((tile_m, D_pad), lambda i, k: (i, 0)),
            scratch_shapes=scratch,
        ),
        compiler_params=pltpu.CompilerParams(
            dimension_semantics=("parallel", "arbitrary"),
            vmem_limit_bytes=vmem_limit,
        ),
        cost_estimate=cost,
    )(x2d, w1, b1_2d, w2, b2_2d)

    out2d = out2d[:M, :D]
    return out2d.reshape(orig_shape)


def fused_mlp_firstdim(x, w1, b1, w2, b2, *, add_residual=False,
                       approximate_gelu=False, mxu_bf16=False):
    """y = [x +] MLP applied over AXIS 1 of x (b, C, T), without materializing transposes.

    w1: (C, H); b1: (H,); w2: (H, C); b2: (C,). Returns (b, C, T).
    """
    B, C, T = x.shape
    H = w1.shape[1]

    x_bytes = jnp.dtype(x.dtype).itemsize
    w_bytes = jnp.dtype(w1.dtype).itemsize
    vmem_limit = _vmem_limit_bytes()
    tile_t, tile_h = _choose_tiles(T, C, H, x_bytes, w_bytes, vmem_limit, tile_align=128)

    # Lane-dense token axis: pad T up to the (128-aligned) token tile; padded columns are
    # computed but sliced off (they never mix into real columns).
    T_pad = _round_up(T, tile_t)
    if T_pad != T:
        x = jnp.pad(x, ((0, 0), (0, 0), (0, T_pad - T)))

    if tile_h >= H:
        tile_h, H_pad, n_hk = H, H, 1
    else:
        H_pad = _round_up(H, tile_h)
        n_hk = H_pad // tile_h
        if H_pad != H:
            w1 = jnp.pad(w1, ((0, 0), (0, H_pad - H)))
            b1 = jnp.pad(b1, ((0, H_pad - H),))
            w2 = jnp.pad(w2, ((0, H_pad - H), (0, 0)))

    b1_2d = b1.reshape(H_pad, 1)
    b2_2d = b2.reshape(C, 1)

    grid = (B, T_pad // tile_t, n_hk)
    weight_streams = 1 if n_hk == 1 else B * grid[1]

    cost = pl.CostEstimate(
        flops=int(4 * B * T_pad * C * H_pad),
        transcendentals=int(B * T_pad * H_pad),
        bytes_accessed=int(2 * B * C * T_pad * x_bytes
                           + weight_streams * (w1.size + w2.size) * w_bytes
                           + (b1_2d.size + b2_2d.size) * w_bytes),
    )

    kernel = functools.partial(
        _mlp_firstdim_kernel, n_hk=n_hk, h_axis=2, add_residual=add_residual,
        approximate_gelu=approximate_gelu,
        mxu_dtype=jnp.bfloat16 if (mxu_bf16 and x.dtype == jnp.float32) else None,
    )
    scratch = [] if n_hk == 1 else [pltpu.VMEM((C, tile_t), jnp.float32)]

    out = pl.pallas_call(
        kernel,
        out_shape=jax.ShapeDtypeStruct((B, C, T_pad), x.dtype),
        grid_spec=pltpu.PrefetchScalarGridSpec(
            num_scalar_prefetch=0,
            grid=grid,
            in_specs=[
                pl.BlockSpec((None, C, tile_t), lambda b, t, k: (b, 0, t)),   # x tile
                pl.BlockSpec((C, tile_h), lambda b, t, k: (0, k)),            # W1 chunk
                pl.BlockSpec((tile_h, 1), lambda b, t, k: (k, 0)),            # b1 chunk
                pl.BlockSpec((tile_h, C), lambda b, t, k: (k, 0)),            # W2 chunk
                pl.BlockSpec((C, 1), lambda b, t, k: (0, 0)),                 # b2
            ],
            out_specs=pl.BlockSpec((None, C, tile_t), lambda b, t, k: (b, 0, t)),
            scratch_shapes=scratch,
        ),
        compiler_params=pltpu.CompilerParams(
            dimension_semantics=("parallel", "parallel", "arbitrary"),
            vmem_limit_bytes=vmem_limit,
        ),
        cost_estimate=cost,
    )(x, w1, b1_2d, w2, b2_2d)

    if T_pad != T:
        out = out[:, :, :T]
    return out


# ----------------------------- MLP_Communicator forward -----------------------------

def mlp_communicator_pallas(x, params, depth=1, *, approximate_gelu=False, mxu_bf16=False):
    """x: (batch, channel, token); [x = x + token_mixer(x); x = x + channel_mixer(x)] * depth."""
    for _ in range(depth):
        # token_mixer: Rearrange('b n d -> b d n') -> MLP over the channel axis -> rearrange
        # back.  Implemented as a contraction over axis 1 inside the kernel (residual fused),
        # so no physical transposes / extra HBM round trips are materialized.
        x = fused_mlp_firstdim(x, *params["token_mixer"], add_residual=True,
                               approximate_gelu=approximate_gelu, mxu_bf16=mxu_bf16)
        # channel_mixer: MLP over the token axis (last axis), residual fused.
        x = fused_mlp_lastdim(x, *params["channel_mixer"], add_residual=True,
                              approximate_gelu=approximate_gelu, mxu_bf16=mxu_bf16)
    return x


# ----------------------------- parameter init & reference -----------------------------

def init_mlp_params(key, input_size, hidden_size, dtype=jnp.float32):
    """Mimics torch.nn.Linear defaults (uniform +/- 1/sqrt(fan_in)); weights stored (in, out)."""
    k1, k2, k3, k4 = jax.random.split(key, 4)
    bound1 = 1.0 / math.sqrt(input_size)
    bound2 = 1.0 / math.sqrt(hidden_size)
    w1 = jax.random.uniform(k1, (input_size, hidden_size), dtype, -bound1, bound1)
    b1 = jax.random.uniform(k2, (hidden_size,), dtype, -bound1, bound1)
    w2 = jax.random.uniform(k3, (hidden_size, input_size), dtype, -bound2, bound2)
    b2 = jax.random.uniform(k4, (input_size,), dtype, -bound2, bound2)
    return (w1, b1, w2, b2)


def init_communicator_params(key, token, channel, hidden_size, dtype=jnp.float32):
    kt, kc = jax.random.split(key)
    return {
        "token_mixer": init_mlp_params(kt, channel, hidden_size, dtype),
        "channel_mixer": init_mlp_params(kc, token, hidden_size, dtype),
    }


def _mlp_ref(x, w1, b1, w2, b2):
    h = x @ w1 + b1
    g = jax.nn.gelu(h, approximate=False)
    return g @ w2 + b2            # dropout = identity in eval mode


def mlp_communicator_ref(x, params, depth=1):
    for _ in range(depth):
        xt = jnp.swapaxes(x, 1, 2)
        x = x + jnp.swapaxes(_mlp_ref(xt, *params["token_mixer"]), 1, 2)
        x = x + _mlp_ref(x, *params["channel_mixer"])
    return x


if __name__ == "__main__":
    # x: (batch, n=channel, d=token) -- token_mixer acts over the channel axis (after the
    # rearrange in the PyTorch module), channel_mixer acts over the token axis.
    batch, channel, token = 2, 32, 16
    hidden_size, depth = 64, 1

    key = jax.random.PRNGKey(0)
    kx, kp = jax.random.split(key)
    x = jax.random.normal(kx, (batch, channel, token), dtype=jnp.float32)
    params = init_communicator_params(kp, token=token, channel=channel, hidden_size=hidden_size)

    out = mlp_communicator_pallas(x, params, depth=depth)
    out = jax.block_until_ready(out)

    ref = mlp_communicator_ref(x, params, depth=depth)
    assert out.shape == x.shape
    assert jnp.allclose(out, ref, atol=1e-4, rtol=1e-4), "mismatch vs reference"

    print("KERNEL_OK")
</pallas_src>

<mosaic_0001>
module attributes {stable_mosaic.version = 11 : i64} {
  func.func @_mlp_firstdim_kernel(%arg0: i32, %arg1: i32, %arg2: i32, %arg3: memref<1x32x128xf32, #tpu.memory_space<vmem>>, %arg4: memref<32x64xf32, #tpu.memory_space<vmem>>, %arg5: memref<64x1xf32, #tpu.memory_space<vmem>>, %arg6: memref<64x32xf32, #tpu.memory_space<vmem>>, %arg7: memref<32x1xf32, #tpu.memory_space<vmem>>, %arg8: memref<1x32x128xf32, #tpu.memory_space<vmem>>) attributes {dimension_semantics = [#tpu.dimension_semantics<parallel>, #tpu.dimension_semantics<parallel>, #tpu.dimension_semantics<arbitrary>], iteration_bounds = array<i64: 2, 1, 1>, scalar_prefetch = 0 : i64, scratch_operands = 0 : i64, tpu.core_type = #tpu.core_type<tc>, window_params = [{transform_indices = @transform_0, window_bounds = array<i64: 1, 32, 128>}, {transform_indices = @transform_1, window_bounds = array<i64: 32, 64>}, {transform_indices = @transform_2, window_bounds = array<i64: 64, 1>}, {transform_indices = @transform_3, window_bounds = array<i64: 64, 32>}, {pipeline_mode = #tpu.pipeline_mode<synchronous>, transform_indices = @transform_4, window_bounds = array<i64: 32, 1>}, {transform_indices = @transform_5, window_bounds = array<i64: 1, 32, 128>}]} {
    %c0 = arith.constant 0 : index
    %c0_0 = arith.constant 0 : index
    %c0_1 = arith.constant 0 : index
    %0 = vector.load %arg3[%c0, %c0_0, %c0_1] : memref<1x32x128xf32, #tpu.memory_space<vmem>>, vector<1x32x128xf32>
    %1 = vector.shape_cast %0 : vector<1x32x128xf32> to vector<32x128xf32>
    %c0_2 = arith.constant 0 : index
    %c0_3 = arith.constant 0 : index
    %2 = vector.load %arg4[%c0_2, %c0_3] : memref<32x64xf32, #tpu.memory_space<vmem>>, vector<32x64xf32>
    %cst = arith.constant dense<0.000000e+00> : vector<64x128xf32>
    %3 = tpu.matmul %2, %1, %cst {dimension_numbers = #tpu.dot_dimension_numbers<[0], [0], [1], [1], [0, 1, 1, 1], [], []>} : vector<32x64xf32>, vector<32x128xf32>, vector<64x128xf32> -> vector<64x128xf32>
    %c0_4 = arith.constant 0 : index
    %c0_5 = arith.constant 0 : index
    %4 = vector.load %arg5[%c0_4, %c0_5] : memref<64x1xf32, #tpu.memory_space<vmem>>, vector<64x1xf32>
    %5 = vector.broadcast %4 : vector<64x1xf32> to vector<64x128xf32>
    %6 = arith.addf %3, %5 : vector<64x128xf32>
    %cst_6 = arith.constant 5.000000e-01 : f32
    %7 = vector.broadcast %cst_6 : f32 to vector<64x128xf32>
    %8 = arith.mulf %7, %6 : vector<64x128xf32>
    %cst_7 = arith.constant 0.707106769 : f32
    %9 = vector.broadcast %cst_7 : f32 to vector<64x128xf32>
    %10 = arith.mulf %6, %9 : vector<64x128xf32>
    %11 = math.erf %10 : vector<64x128xf32>
    %cst_8 = arith.constant 1.000000e+00 : f32
    %12 = vector.broadcast %cst_8 : f32 to vector<64x128xf32>
    %13 = arith.addf %12, %11 : vector<64x128xf32>
    %14 = arith.mulf %8, %13 : vector<64x128xf32>
    %c0_9 = arith.constant 0 : index
    %c0_10 = arith.constant 0 : index
    %15 = vector.load %arg6[%c0_9, %c0_10] : memref<64x32xf32, #tpu.memory_space<vmem>>, vector<64x32xf32>
    %cst_11 = arith.constant dense<0.000000e+00> : vector<32x128xf32>
    %16 = tpu.matmul %15, %14, %cst_11 {dimension_numbers = #tpu.dot_dimension_numbers<[0], [0], [1], [1], [0, 1, 1, 1], [], []>} : vector<64x32xf32>, vector<64x128xf32>, vector<32x128xf32> -> vector<32x128xf32>
    %c0_12 = arith.constant 0 : index
    %c0_13 = arith.constant 0 : index
    %17 = vector.load %arg7[%c0_12, %c0_13] : memref<32x1xf32, #tpu.memory_space<vmem>>, vector<32x1xf32>
    %18 = vector.broadcast %17 : vector<32x1xf32> to vector<32x128xf32>
    %19 = arith.addf %16, %18 : vector<32x128xf32>
    %20 = arith.addf %19, %1 : vector<32x128xf32>
    %c0_14 = arith.constant 0 : index
    %c0_15 = arith.constant 0 : index
    %c0_16 = arith.constant 0 : index
    %21 = vector.load %arg8[%c0_14, %c0_15, %c0_16] : memref<1x32x128xf32, #tpu.memory_space<vmem>>, vector<1x32x128xf32>
    %22 = vector.shape_cast %21 : vector<1x32x128xf32> to vector<32x128xf32>
    %23 = vector.shape_cast %20 : vector<32x128xf32> to vector<1x32x128xf32>
    tpu.vector_store %arg8[%c0_14, %c0_15, %c0_16], %23 {strides = array<i32>} : memref<1x32x128xf32, #tpu.memory_space<vmem>>, vector<1x32x128xf32>,
    return
  }
  func.func @transform_0(%arg0: i32, %arg1: i32, %arg2: i32) -> (i32, i32, i32) {
    %c0_i32 = arith.constant 0 : i32
    %c0_i32_0 = arith.constant 0 : i32
    return %arg0, %c0_i32, %arg1 : i32, i32, i32
  }
  func.func @transform_1(%arg0: i32, %arg1: i32, %arg2: i32) -> (i32, i32) {
    %c0_i32 = arith.constant 0 : i32
    %c0_i32_0 = arith.constant 0 : i32
    return %c0_i32, %arg2 : i32, i32
  }
  func.func @transform_2(%arg0: i32, %arg1: i32, %arg2: i32) -> (i32, i32) {
    %c0_i32 = arith.constant 0 : i32
    %c0_i32_0 = arith.constant 0 : i32
    return %arg2, %c0_i32 : i32, i32
  }
  func.func @transform_3(%arg0: i32, %arg1: i32, %arg2: i32) -> (i32, i32) {
    %c0_i32 = arith.constant 0 : i32
    %c0_i32_0 = arith.constant 0 : i32
    return %arg2, %c0_i32 : i32, i32
  }
  func.func @transform_4(%arg0: i32, %arg1: i32, %arg2: i32) -> (i32, i32) {
    %c0_i32 = arith.constant 0 : i32
    %c0_i32_0 = arith.constant 0 : i32
    %c0_i32_1 = arith.constant 0 : i32
    return %c0_i32, %c0_i32_0 : i32, i32
  }
  func.func @transform_5(%arg0: i32, %arg1: i32, %arg2: i32) -> (i32, i32, i32) {
    %c0_i32 = arith.constant 0 : i32
    %c0_i32_0 = arith.constant 0 : i32
    return %arg0, %c0_i32, %arg1 : i32, i32, i32
  }
}

</mosaic_0001>

<llo_original>
// kernel: tpu_custom_call.1
$region0: #{tpu_custom_call.1}
  #allocation0 [shape = 'u32[]', space=smem, size = 0x4, offset = 0x4, fixed_abs, tag = 'smem constant byte address 0x4 - core index']
  #allocation1 [shape = 'u32[144,128]{1,0:T(1,128)}', space=vmem, size = 0x12000, scoped, tag = 'internal scratch']
  %s0 = inlined_call_operand.vmem [shape: f32[2,32,128], index: 0, kind: input, shape index: {}]
  %s1 = inlined_call_operand.vmem [shape: f32[32,64], index: 1, kind: input, shape index: {}]
  %s2 = inlined_call_operand.vmem [shape: f32[64,1], index: 2, kind: input, shape index: {}]
  %s3 = inlined_call_operand.vmem [shape: f32[64,32], index: 3, kind: input, shape index: {}]
  %s4 = inlined_call_operand.vmem [shape: f32[32,1], index: 4, kind: input, shape index: {}]
  %s5 = inlined_call_operand.hbm [shape: f32[2,32,128], index: 5, kind: output, shape index: {}]
  %s6 = sld [smem:[#allocation0]]
  $region53: #{tpu_custom_call.1} parent=0
    _
  %s8 = ssub.s32 1, %s6
  %s9 = scalar_select 0, %s8, %s6
  $region1: #{tpu_custom_call.1} parent=0
    #allocation2 [shape = 'u8[32768]{0}', space=vmem, size = 0x8000, scoped, tag = 'output window, operand 0']
    #allocation3 [shape = 's32[2]{0}', space=sflag, size = 0x8, scoped, tag = 'scoped memory for tpu_custom_call.1']
    %10 = vsyncpa [#allocation3], 0
    %s11 = scalar_lea.sflag [#allocation3], 1
    %12 = vsyncpa %s11, 0
    loop: start=0, step=1, limit=4
    $region2: #{tpu_custom_call.1} parent=1 // loop_pre_header
      _
    $region3: #{tpu_custom_call.1} parent=1 // loop_header
      %s14 = sphi 0, %s18
      %p15 = scmp.ge.s32.totalorder %s14, 4
      %s21 = sphi 0, %s40
      %s22 = sphi 0, %s36
      %s23 = sphi 0, %s32
      %s24 = sphi 0, %s21
      %s25 = sphi 0, %s22
      %s26 = sphi 0, %s23
      %s27 = sphi 0, %s24
      %s28 = sphi 0, %s25
      %s29 = sphi 0, %s26
      %s45 = sphi 0, %s47
      %s48 = sphi 0, %s45
      %s49 = sphi 0, %s48
      %s65 = sphi 0, %s49
      %s71 = sphi 0, %s73
      %s74 = sphi 0, %s71
      %s75 = sphi 0, %s74
      %s91 = sphi 0, %s75
      %s97 = sphi 0, %s99
      %s100 = sphi 0, %s97
      %s101 = sphi 0, %s100
      %s117 = sphi 0, %s101
      %s123 = sphi 0, %s125
      %s126 = sphi 0, %s123
      %s127 = sphi 0, %s126
      %s143 = sphi 0, %s127
      %s147 = sphi 0, %s147
      %s149 = sphi 0, %s147
      %s150 = sphi 0, %s149
      %s164 = sphi 0, %s150
      %s172 = sphi 0, %s174
      %s175 = sphi 0, %s172
      %s176 = sphi 0, %s175
      %s192 = sphi 0, %s176
    $region4: #{tpu_custom_call.1} parent=1 // loop_header_branch
      %17 = sbr.rel (%p15) target = $region8
    $region5: #{tpu_custom_call.1} parent=1 // loop_body
      %s19 = ssub.s32 %s14, 1
      %s20 = ssub.s32 %s14, 2
      %s30 = sadd.s32 1, %s23
      %p31 = scmp.ge.s32.totalorder %s30, 1
      %s32 = scalar_select %p31, 0, %s30
      %s33 = sadd.s32 1, %s22
      %s34 = scalar_select %p31, %s33, %s22
      %p35 = scmp.ge.s32.totalorder %s34, 1
      %s36 = scalar_select %p35, 0, %s34
      %s37 = sadd.s32 1, %s21
      %s38 = scalar_select %p35, %s37, %s21
      %p39 = scmp.ge.s32.totalorder %s38, 2
      %s40 = scalar_select %p39, 0, %s38
      %s41 = ssub.s32 %s21, %s40
      %s42 = ssub.s32 %s22, %s36
      %s43 = sor.u32 %s41, %s42
      %p44 = scmp.eq.s32.totalorder %s43, 0
      %s46 = sadd.s32 %s45, 1
      %s47 = scalar_select %p44, %s45, %s46
      %p50 = pneg %p44
      %p51 = scmp.eq.s32.totalorder %s14, 1
      %p52 = por %p50, %p51
      %p53 = scmp.ne.s32.totalorder %s45, %s48
      %p54 = scmp.eq.s32.totalorder %s14, 0
      %p55 = por %p53, %p54
      %p56 = scmp.ne.s32.totalorder %s45, %s48
      %p57 = scmp.eq.s32.totalorder %s19, 1
      %p58 = por %p56, %p57
      %p59 = scmp.ne.s32.totalorder %s48, %s49
      %p60 = scmp.eq.s32.totalorder %s19, 0
      %p61 = por %p59, %p60
      %p62 = scmp.ne.s32.totalorder %s48, %s49
      %p63 = scmp.eq.s32.totalorder %s20, 1
      %p64 = por %p62, %p63
      %p66 = scmp.ne.s32.totalorder %s49, %s65
      %p67 = scmp.eq.s32.totalorder %s20, 0
      %p68 = por %p66, %p67
      %s69 = ssub.s32 %s23, %s32
      %p70 = scmp.eq.s32.totalorder %s69, 0
      %s72 = sadd.s32 %s71, 1
      %s73 = scalar_select %p70, %s71, %s72
      %p76 = pneg %p70
      %p77 = scmp.eq.s32.totalorder %s14, 1
      %p78 = por %p76, %p77
      %p79 = scmp.ne.s32.totalorder %s71, %s74
      %p80 = scmp.eq.s32.totalorder %s14, 0
      %p81 = por %p79, %p80
      %p82 = scmp.ne.s32.totalorder %s71, %s74
      %p83 = scmp.eq.s32.totalorder %s19, 1
      %p84 = por %p82, %p83
      %p85 = scmp.ne.s32.totalorder %s74, %s75
      %p86 = scmp.eq.s32.totalorder %s19, 0
      %p87 = por %p85, %p86
      %p88 = scmp.ne.s32.totalorder %s74, %s75
      %p89 = scmp.eq.s32.totalorder %s20, 1
      %p90 = por %p88, %p89
      %p92 = scmp.ne.s32.totalorder %s75, %s91
      %p93 = scmp.eq.s32.totalorder %s20, 0
      %p94 = por %p92, %p93
      %s95 = ssub.s32 %s23, %s32
      %p96 = scmp.eq.s32.totalorder %s95, 0
      %s98 = sadd.s32 %s97, 1
      %s99 = scalar_select %p96, %s97, %s98
      %p102 = pneg %p96
      %p103 = scmp.eq.s32.totalorder %s14, 1
      %p104 = por %p102, %p103
      %p105 = scmp.ne.s32.totalorder %s97, %s100
      %p106 = scmp.eq.s32.totalorder %s14, 0
      %p107 = por %p105, %p106
      %p108 = scmp.ne.s32.totalorder %s97, %s100
      %p109 = scmp.eq.s32.totalorder %s19, 1
      %p110 = por %p108, %p109
      %p111 = scmp.ne.s32.totalorder %s100, %s101
      %p112 = scmp.eq.s32.totalorder %s19, 0
      %p113 = por %p111, %p112
      %p114 = scmp.ne.s32.totalorder %s100, %s101
      %p115 = scmp.eq.s32.totalorder %s20, 1
      %p116 = por %p114, %p115
      %p118 = scmp.ne.s32.totalorder %s101, %s117
      %p119 = scmp.eq.s32.totalorder %s20, 0
      %p120 = por %p118, %p119
      %s121 = ssub.s32 %s23, %s32
      %p122 = scmp.eq.s32.totalorder %s121, 0
      %s124 = sadd.s32 %s123, 1
      %s125 = scalar_select %p122, %s123, %s124
      %p128 = pneg %p122
      %p129 = scmp.eq.s32.totalorder %s14, 1
      %p130 = por %p128, %p129
      %p131 = scmp.ne.s32.totalorder %s123, %s126
      %p132 = scmp.eq.s32.totalorder %s14, 0
      %p133 = por %p131, %p132
      %p134 = scmp.ne.s32.totalorder %s123, %s126
      %p135 = scmp.eq.s32.totalorder %s19, 1
      %p136 = por %p134, %p135
      %p137 = scmp.ne.s32.totalorder %s126, %s127
      %p138 = scmp.eq.s32.totalorder %s19, 0
      %p139 = por %p137, %p138
      %p140 = scmp.ne.s32.totalorder %s126, %s127
      %p141 = scmp.eq.s32.totalorder %s20, 1
      %p142 = por %p140, %p141
      %p144 = scmp.ne.s32.totalorder %s127, %s143
      %p145 = scmp.eq.s32.totalorder %s20, 0
      %p146 = por %p144, %p145
      %s148 = sadd.s32 %s147, 1
      %p151 = scmp.eq.s32.totalorder %s14, 1
      %p152 = scmp.ne.s32.totalorder %s147, %s149
      %p153 = scmp.eq.s32.totalorder %s14, 0
      %p154 = por %p152, %p153
      %p155 = scmp.ne.s32.totalorder %s147, %s149
      %p156 = scmp.eq.s32.totalorder %s19, 1
      %p157 = por %p155, %p156
      %p158 = scmp.ne.s32.totalorder %s149, %s150
      %p159 = scmp.eq.s32.totalorder %s19, 0
      %p160 = por %p158, %p159
      %p161 = scmp.ne.s32.totalorder %s149, %s150
      %p162 = scmp.eq.s32.totalorder %s20, 1
      %p163 = por %p161, %p162
      %p165 = scmp.ne.s32.totalorder %s150, %s164
      %p166 = scmp.eq.s32.totalorder %s20, 0
      %p167 = por %p165, %p166
      %s168 = ssub.s32 %s21, %s40
      %s169 = ssub.s32 %s22, %s36
      %s170 = sor.u32 %s168, %s169
      %p171 = scmp.eq.s32.totalorder %s170, 0
      %s173 = sadd.s32 %s172, 1
      %s174 = scalar_select %p171, %s172, %s173
      %p177 = pneg %p171
      %p178 = scmp.eq.s32.totalorder %s14, 1
      %p179 = por %p177, %p178
      %p180 = scmp.ne.s32.totalorder %s172, %s175
      %p181 = scmp.eq.s32.totalorder %s14, 0
      %p182 = por %p180, %p181
      %p183 = scmp.ne.s32.totalorder %s172, %s175
      %p184 = scmp.eq.s32.totalorder %s19, 1
      %p185 = por %p183, %p184
      %p186 = scmp.ne.s32.totalorder %s175, %s176
      %p187 = scmp.eq.s32.totalorder %s19, 0
      %p188 = por %p186, %p187
      %p189 = scmp.ne.s32.totalorder %s175, %s176
      %p190 = scmp.eq.s32.totalorder %s20, 1
      %p191 = por %p189, %p190
      %p193 = scmp.ne.s32.totalorder %s176, %s192
      %p194 = scmp.eq.s32.totalorder %s20, 0
      %p195 = por %p193, %p194
      %p196 = scmp.le.s32.totalorder 1, %s14
      %p197 = scmp.lt.s32.totalorder %s14, 3
      %p198 = pnand %p196, %p197
      %p199 = pneg %p198
      // Predicated region
      $region9: #{tpu_custom_call.1} parent=5 // pred_check
        _
      $region10: #{tpu_custom_call.1} parent=5 // pred_check_branch
        %201 = sbr.rel (%p198) target = $region12
      $region11: #{tpu_custom_call.1} parent=5 // pred_region
        %s202 = ssub.s32 %s14, 1
        // Predicated region
        $region13: #{tpu_custom_call.1} parent=11 // pred_check
          %p203 = pneg %p87
        $region14: #{tpu_custom_call.1} parent=11 // pred_check_branch
          %205 = sbr.rel (%p203) target = $region16
        $region15: #{tpu_custom_call.1} parent=11 // pred_region
          %p206 = scmp.lt.s32.totalorder %s26, 0
          %s207 = scalar_select %p206, %s26, 0
          %s208 = smul.addr %s207, 8
          %s209 = scalar_lea.vmem %s1, %s208
        $region16: #{tpu_custom_call.1} parent=11 // pred_fallthru
          _
        // Predicated region
        $region17: #{tpu_custom_call.1} parent=11 // pred_check
          %p210 = pneg %p113
        $region18: #{tpu_custom_call.1} parent=11 // pred_check_branch
          %212 = sbr.rel (%p210) target = $region20
        $region19: #{tpu_custom_call.1} parent=11 // pred_region
          %s213 = smul.u32 8, %s26
          %p214 = scmp.lt.s32.totalorder %s213, 7
          %s215 = scalar_select %p214, %s213, 7
          %s216 = smul.addr %s215, 8
          %s217 = scalar_lea.vmem %s2, %s216
          %s218 = smul.u32 8, %s26
        $region20: #{tpu_custom_call.1} parent=11 // pred_fallthru
          _
        // Predicated region
        $region21: #{tpu_custom_call.1} parent=11 // pred_check
          %p219 = pneg %p139
        $region22: #{tpu_custom_call.1} parent=11 // pred_check_branch
          %221 = sbr.rel (%p219) target = $region24
        $region23: #{tpu_custom_call.1} parent=11 // pred_region
          %s222 = smul.u32 8, %s26
          %p223 = scmp.lt.s32.totalorder %s222, 7
          %s224 = scalar_select %p223, %s222, 7
          %s225 = smul.addr %s224, 8
          %s226 = scalar_lea.vmem %s3, %s225
          %s227 = smul.u32 8, %s26
        $region24: #{tpu_custom_call.1} parent=11 // pred_fallthru
          _
        // Predicated region
        $region25: #{tpu_custom_call.1} parent=11 // pred_check
          %p228 = pneg %p160
        $region26: #{tpu_custom_call.1} parent=11 // pred_check_branch
          %230 = sbr.rel (%p228) target = $region28
        $region27: #{tpu_custom_call.1} parent=11 // pred_region
          _
        $region28: #{tpu_custom_call.1} parent=11 // pred_fallthru
          _
      $region12: #{tpu_custom_call.1} parent=5 // pred_fallthru
        _
      %p231 = scmp.lt.s32.totalorder %s14, 2
      // Predicated region
      $region29: #{tpu_custom_call.1} parent=5 // pred_check
        %p232 = pneg %p231
      $region30: #{tpu_custom_call.1} parent=5 // pred_check_branch
        %234 = sbr.rel (%p232) target = $region32
      $region31: #{tpu_custom_call.1} parent=5 // pred_region
        // Predicated region
        $region33: #{tpu_custom_call.1} parent=31 // pred_check
          %p235 = pneg %p55
        $region34: #{tpu_custom_call.1} parent=31 // pred_check_branch
          %237 = sbr.rel (%p235) target = $region36
        $region35: #{tpu_custom_call.1} parent=31 // pred_region
          %p238 = scmp.lt.s32.totalorder %s21, 1
          %s239 = scalar_select %p238, %s21, 1
          %p240 = scmp.lt.s32.totalorder %s22, 0
          %s241 = scalar_select %p240, %s22, 0
          %s242 = smul.addr %s239, 4
          %s243 = sadd.s32 %s241, %s242
          %s244 = smul.addr %s243, 8
          %s245 = scalar_lea.vmem %s0, %s244
        $region36: #{tpu_custom_call.1} parent=31 // pred_fallthru
          _
      $region32: #{tpu_custom_call.1} parent=5 // pred_fallthru
        _
      %p246 = scmp.le.s32.totalorder 1, %s14
      %p247 = scmp.lt.s32.totalorder %s14, 3
      %p248 = pnand %p246, %p247
      %p249 = pneg %p248
      // Predicated region
      $region37: #{tpu_custom_call.1} parent=5 // pred_check
        _
      $region38: #{tpu_custom_call.1} parent=5 // pred_check_branch
        %251 = sbr.rel (%p248) target = $region40
      $region39: #{tpu_custom_call.1} parent=5 // pred_region
        %s252 = ssub.s32 %s14, 1
        %p253 = scmp.lt.s32.totalorder %s24, 1
        %s254 = scalar_select %p253, %s24, 1
        %p255 = scmp.lt.s32.totalorder %s25, 0
        %s256 = scalar_select %p255, %s25, 0
        %s257 = smul.addr %s254, 4
        %s258 = sadd.s32 %s256, %s257
        %s259 = smul.addr %s258, 8
        %s260 = scalar_lea.vmem %s0, %s259
        %p261 = pneg %p61
        %p262 = pneg %p58
        %p263 = scmp.lt.s32.totalorder %s26, 0
        %s264 = scalar_select %p263, %s26, 0
        %s265 = smul.addr %s264, 8
        %s266 = scalar_lea.vmem %s1, %s265
        %p267 = pneg %p87
        %p268 = pneg %p84
        %s269 = smul.u32 8, %s26
        %p270 = scmp.lt.s32.totalorder %s269, 7
        %s271 = scalar_select %p270, %s269, 7
        %s272 = smul.addr %s271, 8
        %s273 = scalar_lea.vmem %s2, %s272
        %p274 = pneg %p113
        %p275 = pneg %p110
        %s276 = smul.u32 8, %s26
        %p277 = scmp.lt.s32.totalorder %s276, 7
        %s278 = scalar_select %p277, %s276, 7
        %s279 = smul.addr %s278, 8
        %s280 = scalar_lea.vmem %s3, %s279
        %p281 = pneg %p139
        %p282 = pneg %p136
        %p283 = pneg %p160
        %p284 = pneg %p157
        %p285 = pneg %p188
        %p286 = pneg %p185
        %s287 = sand.u32 %s175, 1
        %s288 = scalar_lea.sflag [#allocation3], %s287
        %s289 = sand.u32 %s175, 1
        %s290 = smul.addr %s289, 32
        %s291 = scalar_lea.vmem [#allocation2], %s290
        %p292 = scmp.lt.s32.totalorder %s24, 1
        %s293 = scalar_select %p292, %s24, 1
        %p294 = scmp.lt.s32.totalorder %s25, 0
        %s295 = scalar_select %p294, %s25, 0
        %s296 = smul.addr %s293, 4
        %s297 = sadd.s32 %s295, %s296
        %s298 = smul.addr %s297, 8
        %s299 = scalar_lea.vmem %s0, %s298
        %p300 = scmp.lt.s32.totalorder %s26, 0
        %s301 = scalar_select %p300, %s26, 0
        %s302 = smul.addr %s301, 8
        %s303 = scalar_lea.vmem %s1, %s302
        %s304 = smul.u32 8, %s26
        %p305 = scmp.lt.s32.totalorder %s304, 7
        %s306 = scalar_select %p305, %s304, 7
        %s307 = smul.addr %s306, 8
        %s308 = scalar_lea.vmem %s2, %s307
        %s309 = smul.u32 8, %s26
        %s310 = smul.u32 8, %s26
        %p311 = scmp.lt.s32.totalorder %s310, 7
        %s312 = scalar_select %p311, %s310, 7
        %s313 = smul.addr %s312, 8
        %s314 = scalar_lea.vmem %s3, %s313
        %s315 = smul.u32 8, %s26
        %v316 = vld [vmem:[%s299] sm:$0xff]
        %v317 = vld [vmem:[%s299 + $0x8] sm:$0xff]
        %v318 = vld [vmem:[%s299 + $0x10] sm:$0xff]
        %v319 = vld [vmem:[%s299 + $0x18] sm:$0xff]
        %v320 = vld [vmem:[%s303] sm:$0xff]
        %v321 = vld [vmem:[%s303 + $0x8] sm:$0xff]
        %v322 = vld [vmem:[%s303 + $0x10] sm:$0xff]
        %v323 = vld [vmem:[%s303 + $0x18] sm:$0xff]
        %v324 = vld [vmem:[%s308] sm:$0xff]
        %v325 = vld [vmem:[%s308 + $0x8] sm:$0xff]
        %v326 = vld [vmem:[%s308 + $0x10] sm:$0xff]
        %v327 = vld [vmem:[%s308 + $0x18] sm:$0xff]
        %v328 = vld [vmem:[%s308 + $0x20] sm:$0xff]
        %v329 = vld [vmem:[%s308 + $0x28] sm:$0xff]
        %v330 = vld [vmem:[%s308 + $0x30] sm:$0xff]
        %v331 = vld [vmem:[%s308 + $0x38] sm:$0xff]
        %333 = vset.pattern.permute.xlu0 0
        %334 = vperm.xlu0 %333, %v324
        %v335 = vpop.permute.xlu0 %334
        %338 = vset.pattern.permute.xlu0 0
        %339 = vperm.xlu0 %338, %v325
        %v340 = vpop.permute.xlu0 %339
        %343 = vset.pattern.permute.xlu0 0
        %344 = vperm.xlu0 %343, %v326
        %v345 = vpop.permute.xlu0 %344
        %348 = vset.pattern.permute.xlu0 0
        %349 = vperm.xlu0 %348, %v327
        %v350 = vpop.permute.xlu0 %349
        %353 = vset.pattern.permute.xlu0 0
        %354 = vperm.xlu0 %353, %v328
        %v355 = vpop.permute.xlu0 %354
        %358 = vset.pattern.permute.xlu0 0
        %359 = vperm.xlu0 %358, %v329
        %v360 = vpop.permute.xlu0 %359
        %363 = vset.pattern.permute.xlu0 0
        %364 = vperm.xlu0 %363, %v330
        %v365 = vpop.permute.xlu0 %364
        %368 = vset.pattern.permute.xlu0 0
        %369 = vperm.xlu0 %368, %v331
        %v370 = vpop.permute.xlu0 %369
        %372 = vxpose.xlu0.b32.start [1/16] %v320, 128
        %373 = vxpose.xlu0.b32.cont [2/16] %v321, 128
        %374 = vxpose.xlu0.b32.cont [3/16] %v322, 128
        %375 = vxpose.xlu0.b32.cont [4/16] %v323, 128
        %376 = vxpose.xlu0.b32.cont [5/16] 0.0, 128
        %377 = vxpose.xlu0.b32.cont [6/16] 0.0, 128
        %378 = vxpose.xlu0.b32.cont [7/16] 0.0, 128
        %379 = vxpose.xlu0.b32.cont [8/16] 0.0, 128
        %380 = vxpose.xlu0.b32.cont [9/16] 0.0, 128
        %381 = vxpose.xlu0.b32.cont [10/16] 0.0, 128
        %382 = vxpose.xlu0.b32.cont [11/16] 0.0, 128
        %383 = vxpose.xlu0.b32.cont [12/16] 0.0, 128
        %384 = vxpose.xlu0.b32.cont [13/16] 0.0, 128
        %385 = vxpose.xlu0.b32.cont [14/16] 0.0, 128
        %386 = vxpose.xlu0.b32.cont [15/16] 0.0, 128
        %387 = vxpose.xlu0.b32.end [16/16] 0.0, 128
        %v388 = vpop.trf.xlu0
        %v389 = vpop.trf.xlu0
        %v390 = vpop.trf.xlu0
        %v391 = vpop.trf.xlu0
        %v392 = vpop.trf.xlu0
        %v393 = vpop.trf.xlu0
        %v394 = vpop.trf.xlu0
        %v395 = vpop.trf.xlu0
        %v396 = vpop.trf.xlu0
        %v397 = vpop.trf.xlu0
        %v398 = vpop.trf.xlu0
        %v399 = vpop.trf.xlu0
        %v400 = vpop.trf.xlu0
        %v401 = vpop.trf.xlu0
        %v402 = vpop.trf.xlu0
        %v403 = vpop.trf.xlu0
        %vm404 = vcmask 261120
        %v406 = vsel %vm404, %v388, 0
        %v409 = vsel %vm404, %v389, 0
        %v412 = vsel %vm404, %v390, 0
        %v415 = vsel %vm404, %v391, 0
        %v418 = vsel %vm404, %v392, 0
        %v421 = vsel %vm404, %v393, 0
        %v424 = vsel %vm404, %v394, 0
        %v427 = vsel %vm404, %v395, 0
        %429 = vmatprep.subr.mxu0 0.0
        %430 = vmatpush1.msra.mxu0 0.0
        %431 = vmatprep.subr.mxu0 0.0
        %432 = vmatpush1.msra.mxu0 0.0
        %433 = vmatprep.subr.mxu0 0.0
        %434 = vmatpush1.msra.mxu0 0.0
        %435 = vmatprep.subr.mxu0 0.0
        %436 = vmatpush1.msra.mxu0 0.0
        %437 = vmatprep.subr.mxu0 0.0
        %438 = vmatpush1.msra.mxu0 0.0
        %439 = vmatprep.subr.mxu0 0.0
        %440 = vmatpush1.msra.mxu0 0.0
        %441 = vmatprep.subr.mxu0 0.0
        %442 = vmatpush1.msra.mxu0 0.0
        %443 = vmatprep.subr.mxu0 0.0
        %444 = vmatpush1.msra.mxu0 0.0
        %445 = vmatprep.subr.mxu0 0.0
        %446 = vmatpush1.msra.mxu0 0.0
        %447 = vmatprep.subr.mxu0 0.0
        %448 = vmatpush1.msra.mxu0 0.0
        %449 = vmatprep.subr.mxu0 0.0
        %450 = vmatpush1.msra.mxu0 0.0
        %451 = vmatprep.subr.mxu0 0.0
        %452 = vmatpush1.msra.mxu0 0.0
        %453 = vmatprep.subr.mxu0 0.0
        %454 = vmatpush1.msra.mxu0 %v319
        %455 = vmatprep.subr.mxu0 0.0
        %456 = vmatpush1.msra.mxu0 %v318
        %457 = vmatprep.subr.mxu0 0.0
        %458 = vmatpush1.msra.mxu0 %v317
        %459 = vmatprep.subr.mxu0 0.0
        %460 = vmatpush1.msra.mxu0 %v316
        %461 = vmatprep.subr.mxu0 0.0
        %462 = vmatpush2.msra.mxu0 0.0
        %463 = vmatprep.subr.mxu0 0.0
        %464 = vmatpush2.msra.mxu0 0.0
        %465 = vmatprep.subr.mxu0 0.0
        %466 = vmatpush2.msra.mxu0 0.0
        %467 = vmatprep.subr.mxu0 0.0
        %468 = vmatpush2.msra.mxu0 0.0
        %469 = vmatprep.subr.mxu0 0.0
        %470 = vmatpush2.msra.mxu0 0.0
        %471 = vmatprep.subr.mxu0 0.0
        %472 = vmatpush2.msra.mxu0 0.0
        %473 = vmatprep.subr.mxu0 0.0
        %474 = vmatpush2.msra.mxu0 0.0
        %475 = vmatprep.subr.mxu0 0.0
        %476 = vmatpush2.msra.mxu0 0.0
        %477 = vmatprep.subr.mxu0 0.0
        %478 = vmatpush2.msra.mxu0 0.0
        %479 = vmatprep.subr.mxu0 0.0
        %480 = vmatpush2.msra.mxu0 0.0
        %481 = vmatprep.subr.mxu0 0.0
        %482 = vmatpush2.msra.mxu0 0.0
        %483 = vmatprep.subr.mxu0 0.0
        %484 = vmatpush2.msra.mxu0 0.0
        %485 = vmatprep.subr.mxu0 0.0
        %486 = vmatpush2.msra.mxu0 0.0
        %487 = vmatprep.subr.mxu0 0.0
        %488 = vmatpush2.msra.mxu0 0.0
        %489 = vmatprep.subr.mxu0 0.0
        %490 = vmatpush2.msra.mxu0 0.0
        %491 = vmatprep.subr.mxu0 0.0
        %492 = vmatpush2.msra.mxu0 0.0
        %493 = vmatprep.mubr.f32.mxu0 0.0
        %494 = vmatmul.mubr.f32.gmra.mxu0 %v406
        %v495 = vpop.f32.mrf.mxu0
        %v496 = vadd.f32 %v335, %v495
        %v497 = vpop.f32.mrf.mxu0
        %498 = vmatprep.mubr.f32.mxu0 0.0
        %499 = vmatmul.mubr.f32.gmra.mxu0 %v409
        %v500 = vpop.f32.mrf.mxu0
        %v501 = vadd.f32 %v340, %v500
        %v502 = vpop.f32.mrf.mxu0
        %503 = vmatprep.mubr.f32.mxu0 0.0
        %504 = vmatmul.mubr.f32.gmra.mxu0 %v412
        %v505 = vpop.f32.mrf.mxu0
        %v506 = vadd.f32 %v345, %v505
        %v507 = vpop.f32.mrf.mxu0
        %508 = vmatprep.mubr.f32.mxu0 0.0
        %509 = vmatmul.mubr.f32.gmra.mxu0 %v415
        %v510 = vpop.f32.mrf.mxu0
        %v511 = vadd.f32 %v350, %v510
        %v512 = vpop.f32.mrf.mxu0
        %513 = vmatprep.mubr.f32.mxu0 0.0
        %514 = vmatmul.mubr.f32.gmra.mxu0 %v418
        %v515 = vpop.f32.mrf.mxu0
        %v516 = vadd.f32 %v355, %v515
        %v517 = vpop.f32.mrf.mxu0
        %518 = vmatprep.mubr.f32.mxu0 0.0
        %519 = vmatmul.mubr.f32.gmra.mxu0 %v421
        %v520 = vpop.f32.mrf.mxu0
        %v521 = vadd.f32 %v360, %v520
        %v522 = vpop.f32.mrf.mxu0
        %523 = vmatprep.mubr.f32.mxu0 0.0
        %524 = vmatmul.mubr.f32.gmra.mxu0 %v424
        %v525 = vpop.f32.mrf.mxu0
        %v526 = vadd.f32 %v365, %v525
        %v527 = vpop.f32.mrf.mxu0
        %528 = vmatprep.mubr.f32.mxu0 0.0
        %529 = vmatmul.mubr.f32.gmra.mxu0 %v427
        %v530 = vpop.f32.mrf.mxu0
        %v531 = vadd.f32 %v370, %v530
        %v532 = vpop.f32.mrf.mxu0
        %533 = vdwg.mxu0
        %v534 = vmul.f32 %v496, 0.5
        %v535 = vmul.f32 %v501, 0.5
        %v536 = vmul.f32 %v506, 0.5
        %v537 = vmul.f32 %v511, 0.5
        %v538 = vmul.f32 %v516, 0.5
        %v539 = vmul.f32 %v521, 0.5
        %v540 = vmul.f32 %v526, 0.5
        %v541 = vmul.f32 %v531, 0.5
        %v542 = vmul.f32 %v496, 0.70710677
        %v543 = vmul.f32 %v501, 0.70710677
        %v544 = vmul.f32 %v506, 0.70710677
        %v545 = vmul.f32 %v511, 0.70710677
        %v546 = vmul.f32 %v516, 0.70710677
        %v547 = vmul.f32 %v521, 0.70710677
        %v548 = vmul.f32 %v526, 0.70710677
        %v549 = vmul.f32 %v531, 0.70710677
        %v550 = verf.f32.pop %v542
        %v551 = verf.f32.pop %v543
        %v552 = verf.f32.pop %v544
        %v553 = verf.f32.pop %v545
        %v554 = verf.f32.pop %v546
        %v555 = verf.f32.pop %v547
        %v556 = verf.f32.pop %v548
        %v557 = verf.f32.pop %v549
        %v558 = vadd.f32 %v550, 1.0
        %v559 = vadd.f32 %v551, 1.0
        %v560 = vadd.f32 %v552, 1.0
        %v561 = vadd.f32 %v553, 1.0
        %v562 = vadd.f32 %v554, 1.0
        %v563 = vadd.f32 %v555, 1.0
        %v564 = vadd.f32 %v556, 1.0
        %v565 = vadd.f32 %v557, 1.0
        %v566 = vmul.f32 %v534, %v558
        %v567 = vmul.f32 %v535, %v559
        %v568 = vmul.f32 %v536, %v560
        %v569 = vmul.f32 %v537, %v561
        %v570 = vmul.f32 %v538, %v562
        %v571 = vmul.f32 %v539, %v563
        %v572 = vmul.f32 %v540, %v564
        %v573 = vmul.f32 %v541, %v565
        %v574 = vld [vmem:[%s314] sm:$0xff]
        %v575 = vld [vmem:[%s314 + $0x8] sm:$0xff]
        %v576 = vld [vmem:[%s314 + $0x10] sm:$0xff]
        %v577 = vld [vmem:[%s314 + $0x18] sm:$0xff]
        %v578 = vld [vmem:[%s314 + $0x20] sm:$0xff]
        %v579 = vld [vmem:[%s314 + $0x28] sm:$0xff]
        %v580 = vld [vmem:[%s314 + $0x30] sm:$0xff]
        %v581 = vld [vmem:[%s314 + $0x38] sm:$0xff]
        %v582 = vld [vmem:[%s4] sm:$0xff]
        %v583 = vld [vmem:[%s4 + $0x8] sm:$0xff]
        %v584 = vld [vmem:[%s4 + $0x10] sm:$0xff]
        %v585 = vld [vmem:[%s4 + $0x18] sm:$0xff]
        %587 = vset.pattern.permute.xlu0 0
        %588 = vperm.xlu0 %587, %v582
        %v589 = vpop.permute.xlu0 %588
        %592 = vset.pattern.permute.xlu0 0
        %593 = vperm.xlu0 %592, %v583
        %v594 = vpop.permute.xlu0 %593
        %597 = vset.pattern.permute.xlu0 0
        %598 = vperm.xlu0 %597, %v584
        %v599 = vpop.permute.xlu0 %598
        %602 = vset.pattern.permute.xlu0 0
        %603 = vperm.xlu0 %602, %v585
        %v604 = vpop.permute.xlu0 %603
        %606 = vxpose.xlu0.b32.start [1/16] %v574, 128
        %607 = vxpose.xlu0.b32.cont [2/16] %v575, 128
        %608 = vxpose.xlu0.b32.cont [3/16] %v576, 128
        %609 = vxpose.xlu0.b32.cont [4/16] %v577, 128
        %610 = vxpose.xlu0.b32.cont [5/16] %v578, 128
        %611 = vxpose.xlu0.b32.cont [6/16] %v579, 128
        %612 = vxpose.xlu0.b32.cont [7/16] %v580, 128
        %613 = vxpose.xlu0.b32.cont [8/16] %v581, 128
        %614 = vxpose.xlu0.b32.cont [9/16] 0.0, 128
        %615 = vxpose.xlu0.b32.cont [10/16] 0.0, 128
        %616 = vxpose.xlu0.b32.cont [11/16] 0.0, 128
        %617 = vxpose.xlu0.b32.cont [12/16] 0.0, 128
        %618 = vxpose.xlu0.b32.cont [13/16] 0.0, 128
        %619 = vxpose.xlu0.b32.cont [14/16] 0.0, 128
        %620 = vxpose.xlu0.b32.cont [15/16] 0.0, 128
        %621 = vxpose.xlu0.b32.end [16/16] 0.0, 128
        %v622 = vpop.trf.xlu0
        %v623 = vpop.trf.xlu0
        %v624 = vpop.trf.xlu0
        %v625 = vpop.trf.xlu0
        %v626 = vpop.trf.xlu0
        %v627 = vpop.trf.xlu0
        %v628 = vpop.trf.xlu0
        %v629 = vpop.trf.xlu0
        %v630 = vpop.trf.xlu0
        %v631 = vpop.trf.xlu0
        %v632 = vpop.trf.xlu0
        %v633 = vpop.trf.xlu0
        %v634 = vpop.trf.xlu0
        %v635 = vpop.trf.xlu0
        %v636 = vpop.trf.xlu0
        %v637 = vpop.trf.xlu0
        %vm638 = vcmask 523264
        %v640 = vsel %vm638, %v622, 0
        %v643 = vsel %vm638, %v623, 0
        %v646 = vsel %vm638, %v624, 0
        %v649 = vsel %vm638, %v625, 0
        %651 = vmatprep.subr.mxu0 0.0
        %652 = vmatpush1.msra.mxu0 0.0
        %653 = vmatprep.subr.mxu0 0.0
        %654 = vmatpush1.msra.mxu0 0.0
        %655 = vmatprep.subr.mxu0 0.0
        %656 = vmatpush1.msra.mxu0 0.0
        %657 = vmatprep.subr.mxu0 0.0
        %658 = vmatpush1.msra.mxu0 0.0
        %659 = vmatprep.subr.mxu0 0.0
        %660 = vmatpush1.msra.mxu0 0.0
        %661 = vmatprep.subr.mxu0 0.0
        %662 = vmatpush1.msra.mxu0 0.0
        %663 = vmatprep.subr.mxu0 0.0
        %664 = vmatpush1.msra.mxu0 0.0
        %665 = vmatprep.subr.mxu0 0.0
        %666 = vmatpush1.msra.mxu0 0.0
        %667 = vmatprep.subr.mxu0 0.0
        %668 = vmatpush1.msra.mxu0 %v573
        %669 = vmatprep.subr.mxu0 0.0
        %670 = vmatpush1.msra.mxu0 %v572
        %671 = vmatprep.subr.mxu0 0.0
        %672 = vmatpush1.msra.mxu0 %v571
        %673 = vmatprep.subr.mxu0 0.0
        %674 = vmatpush1.msra.mxu0 %v570
        %675 = vmatprep.subr.mxu0 0.0
        %676 = vmatpush1.msra.mxu0 %v569
        %677 = vmatprep.subr.mxu0 0.0
        %678 = vmatpush1.msra.mxu0 %v568
        %679 = vmatprep.subr.mxu0 0.0
        %680 = vmatpush1.msra.mxu0 %v567
        %681 = vmatprep.subr.mxu0 0.0
        %682 = vmatpush1.msra.mxu0 %v566
        %683 = vmatprep.subr.mxu0 0.0
        %684 = vmatpush2.msra.mxu0 0.0
        %685 = vmatprep.subr.mxu0 0.0
        %686 = vmatpush2.msra.mxu0 0.0
        %687 = vmatprep.subr.mxu0 0.0
        %688 = vmatpush2.msra.mxu0 0.0
        %689 = vmatprep.subr.mxu0 0.0
        %690 = vmatpush2.msra.mxu0 0.0
        %691 = vmatprep.subr.mxu0 0.0
        %692 = vmatpush2.msra.mxu0 0.0
        %693 = vmatprep.subr.mxu0 0.0
        %694 = vmatpush2.msra.mxu0 0.0
        %695 = vmatprep.subr.mxu0 0.0
        %696 = vmatpush2.msra.mxu0 0.0
        %697 = vmatprep.subr.mxu0 0.0
        %698 = vmatpush2.msra.mxu0 0.0
        %699 = vmatprep.subr.mxu0 0.0
        %700 = vmatpush2.msra.mxu0 0.0
        %701 = vmatprep.subr.mxu0 0.0
        %702 = vmatpush2.msra.mxu0 0.0
        %703 = vmatprep.subr.mxu0 0.0
        %704 = vmatpush2.msra.mxu0 0.0
        %705 = vmatprep.subr.mxu0 0.0
        %706 = vmatpush2.msra.mxu0 0.0
        %707 = vmatprep.subr.mxu0 0.0
        %708 = vmatpush2.msra.mxu0 0.0
        %709 = vmatprep.subr.mxu0 0.0
        %710 = vmatpush2.msra.mxu0 0.0
        %711 = vmatprep.subr.mxu0 0.0
        %712 = vmatpush2.msra.mxu0 0.0
        %713 = vmatprep.subr.mxu0 0.0
        %714 = vmatpush2.msra.mxu0 0.0
        %715 = vmatprep.mubr.f32.mxu0 0.0
        %716 = vmatmul.mubr.f32.gmra.mxu0 %v640
        %v717 = vpop.f32.mrf.mxu0
        %v718 = vadd.f32 %v589, %v717
        %v719 = vpop.f32.mrf.mxu0
        %720 = vmatprep.mubr.f32.mxu0 0.0
        %721 = vmatmul.mubr.f32.gmra.mxu0 %v643
        %v722 = vpop.f32.mrf.mxu0
        %v723 = vadd.f32 %v594, %v722
        %v724 = vpop.f32.mrf.mxu0
        %725 = vmatprep.mubr.f32.mxu0 0.0
        %726 = vmatmul.mubr.f32.gmra.mxu0 %v646
        %v727 = vpop.f32.mrf.mxu0
        %v728 = vadd.f32 %v599, %v727
        %v729 = vpop.f32.mrf.mxu0
        %730 = vmatprep.mubr.f32.mxu0 0.0
        %731 = vmatmul.mubr.f32.gmra.mxu0 %v649
        %v732 = vpop.f32.mrf.mxu0
        %v733 = vadd.f32 %v604, %v732
        %v734 = vpop.f32.mrf.mxu0
        %735 = vdwg.mxu0
        %v736 = vadd.f32 %v718, %v316
        %v737 = vadd.f32 %v723, %v317
        %v738 = vadd.f32 %v728, %v318
        %v739 = vadd.f32 %v733, %v319
        %740 = vst [vmem:[%s291] sm:$0xff] %v736
        %741 = vst [vmem:[%s291 + $0x8] sm:$0xff] %v737
        %742 = vst [vmem:[%s291 + $0x10] sm:$0xff] %v738
        %743 = vst [vmem:[%s291 + $0x18] sm:$0xff] %v739
        %s744 = sand.u32 %s175, 1
        %s745 = scalar_lea.sflag [#allocation3], %s744
        %s746 = sand.u32 %s175, 1
        %s747 = smul.addr %s746, 32
        %s748 = scalar_lea.vmem [#allocation2], %s747
        // Predicated region
        $region41: #{tpu_custom_call.1} parent=39 // pred_check
          %p749 = pneg %p185
        $region42: #{tpu_custom_call.1} parent=39 // pred_check_branch
          %751 = sbr.rel (%p749) target = $region44
        $region43: #{tpu_custom_call.1} parent=39 // pred_region
          %s753 = ssub.s32 512, 512
          %754 = vsyncadd %s745, %s753
          %s755 = smul.addr %s24, 4
          %s756 = sadd.s32 %s25, %s755
          %s757 = smul.addr %s756, 128
          %s758 = scalar_lea.hbm %s5, %s757
          %s759 = sshll.u32 %s748, 4
          %s760 = int_to_ptr.vmem [resolvable:$true] %s759
          %765 = dma.vmem_to_hbm [thread:$0]  %s760, 512, %s758, %s745, 128, 128, 8
        $region44: #{tpu_custom_call.1} parent=39 // pred_fallthru
          _
      $region40: #{tpu_custom_call.1} parent=5 // pred_fallthru
        _
      %p766 = scmp.le.s32.totalorder 2, %s14
      // Predicated region
      $region45: #{tpu_custom_call.1} parent=5 // pred_check
        %p767 = pneg %p766
      $region46: #{tpu_custom_call.1} parent=5 // pred_check_branch
        %769 = sbr.rel (%p767) target = $region48
      $region47: #{tpu_custom_call.1} parent=5 // pred_region
        %s770 = ssub.s32 %s14, 2
        // Predicated region
        $region49: #{tpu_custom_call.1} parent=47 // pred_check
          %p771 = pneg %p191
        $region50: #{tpu_custom_call.1} parent=47 // pred_check_branch
          %773 = sbr.rel (%p771) target = $region52
        $region51: #{tpu_custom_call.1} parent=47 // pred_region
          %s774 = sand.u32 %s176, 1
          %s775 = scalar_lea.sflag [#allocation3], %s774
          %s776 = sand.u32 %s176, 1
          %s777 = smul.addr %s776, 32
          %s778 = scalar_lea.vmem [#allocation2], %s777
          %779 = dma.done %s775, 512
        $region52: #{tpu_custom_call.1} parent=47 // pred_fallthru
          _
      $region48: #{tpu_custom_call.1} parent=5 // pred_fallthru
        _
    $region6: #{tpu_custom_call.1} parent=1 // loop_footer
      %s18 = sadd.s32 1, %s14
    $region7: #{tpu_custom_call.1} parent=1 // loop_footer_branch
      %13 = sbr.rel target = $region3
    $region8: #{tpu_custom_call.1} parent=1 // loop_exit
      _
    %780 = vsyncpa [#allocation3], 1
    %s781 = scalar_lea.sflag [#allocation3], 1
    %782 = vsyncpa %s781, 1

</llo_original>
